<compile_context>
chip_gen: v7x
topology: tpu7x:2x2x1
jax: 0.10.0
libtpu: 0.0.40
codegen_flags: <defaults>
</compile_context>

<pallas_src>
import functools

import jax
import jax.numpy as jnp
import numpy as np
from jax import lax
from jax.experimental import pallas as pl
from jax.experimental.pallas import tpu as pltpu


# ----------------------------- Pallas kernel -----------------------------

def _self_attn_kernel(xq_ref, xf_ref, wkv_ref, bkv_ref, wqt_ref, bq_ref, o_ref, *, dq_pad, C):
    """One (batch, query-tile) grid step.

    xq_ref : (1, C, TQ)   query columns of x (f32, also used for the residual)
    xf_ref : (1, C, N)    full feature map (f32) — resident across query tiles
    wkv_ref: (Dkv, C)     bf16, rows = [Wk ; 0-pad ; gamma*Wv ; 0 (ones-row)]
    bkv_ref: (Dkv, 1)     f32,  rows = [bk ; 0     ; gamma*bv ; 1.0]
    wqt_ref: (C, dq_pad)  bf16, Wq^T zero-padded to dq_pad columns
    bq_ref : (1, dq_pad)  f32
    o_ref  : (1, C, TQ)   gamma*attention(x) + x for this query tile (lane-dense)
    """
    x_q = xq_ref[0]                                   # (C, TQ) f32
    x_f = xf_ref[0]                                   # (C, N)  f32

    xq_bf = x_q.astype(jnp.bfloat16)
    xf_bf = x_f.astype(jnp.bfloat16)

    # Fused K / gamma*V / ones projection on the full feature map: one bf16 MXU matmul,
    # f32 accumulation.  (Recomputed per query tile — cheap relative to attention; see TODO.)
    kv = jnp.dot(wkv_ref[...], xf_bf, preferred_element_type=jnp.float32) + bkv_ref[...]
    k = kv[:dq_pad, :].astype(jnp.bfloat16)           # (dq_pad, N)  zero rows beyond dq
    v_aug = kv[dq_pad:, :].astype(jnp.bfloat16)       # (C+1, N): gamma*V rows + all-ones row

    # Q projection, produced already transposed (TQ, dq_pad) so the energy matmul is canonical.
    q_t = lax.dot_general(xq_bf, wqt_ref[...], (((0,), (0,)), ((), ())),
                          preferred_element_type=jnp.float32) + bq_ref[...]   # (TQ, dq_pad) f32
    q_t = q_t.astype(jnp.bfloat16)

    # Scores + numerically-stable *unnormalized* softmax (stats stay f32).
    energy = jnp.dot(q_t, k, preferred_element_type=jnp.float32)              # (TQ, N) f32
    m = jnp.max(energy, axis=-1, keepdims=True)                               # (TQ, 1) f32
    p = jnp.exp(energy - m).astype(jnp.bfloat16)                              # (TQ, N) bf16

    # Value reduction; the appended ones row makes the same matmul emit l[i] = sum_j p[i,j]
    # (f32-accumulated) as a lane-dense (1, TQ) row -> deferred normalization on (C, TQ).
    out_aug = lax.dot_general(v_aug, p, (((1,), (1,)), ((), ())),
                              preferred_element_type=jnp.float32)             # (C+1, TQ) f32
    inv_l = pl.reciprocal(out_aug[C:C + 1, :], approx=True)                   # (1, TQ), EUP
    o_ref[0] = out_aug[:C, :] * inv_l + x_q                                   # gamma*attn_out + x


# ----------------------------- wrapper -----------------------------

def _pick_query_tile(N):
    # Prefer >= 2 query tiles (keeps both v7x TensorCores busy even when B is 1/odd) while
    # keeping the output block's lane dim a multiple of 128 (unmasked stores).
    for t in (512, 256, 128):
        if N % t == 0 and N // t >= 2:
            return t
    return N  # small feature maps (N < 256): single tile; N < 128 -> masked stores (perf cliff only)


@jax.jit
def self_attn_forward(x, params):
    """x: (B, C, H, W) float32 -> (B, C, H, W). Matches Self_Attn.forward (with_attn=False)."""
    B, C, H, W = x.shape
    N = H * W
    dq = params['wq'].shape[0]                      # C // 8
    dq_pad = max(16, ((dq + 15) // 16) * 16)        # 16-row pad: bf16 packs 16 sublanes per vreg
    Dkv = dq_pad + C + 1                            # [K ; pad ; gamma*V ; ones]
    TQ = _pick_query_tile(N)

    gamma = params['gamma'].astype(jnp.float32)

    # Concatenated K / gamma-folded V weights (bf16).  The final all-zero weight row with
    # bias 1.0 produces a constant all-ones row in the projection output, which the second
    # matmul turns into the softmax denominator l (exact algebra, gamma folding exact).
    w_kv = jnp.zeros((Dkv, C), jnp.float32)
    w_kv = w_kv.at[:dq].set(params['wk'])
    w_kv = w_kv.at[dq_pad:dq_pad + C].set(gamma * params['wv'])
    w_kv = w_kv.astype(jnp.bfloat16)

    b_kv = jnp.zeros((Dkv, 1), jnp.float32)
    b_kv = b_kv.at[:dq, 0].set(params['bk'])
    b_kv = b_kv.at[dq_pad:dq_pad + C, 0].set(gamma * params['bv'])
    b_kv = b_kv.at[Dkv - 1, 0].set(1.0)

    w_qt = jnp.zeros((C, dq_pad), jnp.float32)      # Wq^T, zero-padded columns
    w_qt = w_qt.at[:, :dq].set(params['wq'].T)
    w_qt = w_qt.astype(jnp.bfloat16)

    b_q = jnp.zeros((1, dq_pad), jnp.float32)
    b_q = b_q.at[0, :dq].set(params['bq'])

    # NCHW -> (B, C, N): same row-major spatial flattening as x.view(B, C, W*H).
    x_flat = x.reshape(B, C, N).astype(jnp.float32)

    # Explicit VMEM budget: double-buffered blocks + live (Dkv,N)/(TQ,N) temporaries, 2x margin.
    est = (2 * (C * N + 2 * C * TQ) * 4                               # x_full, x_q, out blocks
           + 2 * (Dkv * C * 2 + Dkv * 4 + C * dq_pad * 2 + dq_pad * 4)  # weights/biases
           + Dkv * N * 4 + (C + 1 + dq_pad) * N * 2 + C * N * 2       # kv, k, v_aug, xf_bf
           + TQ * dq_pad * 6 + TQ * N * 6 + (C + 1) * TQ * 4)         # q_t, energy, p, out_aug
    vmem_limit = int(min(96 * 2 ** 20, max(32 * 2 ** 20, 2 * est)))

    out = pl.pallas_call(
        functools.partial(_self_attn_kernel, dq_pad=dq_pad, C=C),
        out_shape=jax.ShapeDtypeStruct((B, C, N), jnp.float32),
        grid_spec=pltpu.PrefetchScalarGridSpec(
            num_scalar_prefetch=0,
            grid=(B, N // TQ),
            in_specs=[
                pl.BlockSpec((1, C, TQ), lambda b, q: (b, 0, q)),      # query columns of x
                pl.BlockSpec((1, C, N), lambda b, q: (b, 0, 0)),       # full x (resident over q)
                pl.BlockSpec((Dkv, C), lambda b, q: (0, 0)),
                pl.BlockSpec((Dkv, 1), lambda b, q: (0, 0)),
                pl.BlockSpec((C, dq_pad), lambda b, q: (0, 0)),
                pl.BlockSpec((1, dq_pad), lambda b, q: (0, 0)),
            ],
            out_specs=pl.BlockSpec((1, C, TQ), lambda b, q: (b, 0, q)),  # lane-dense output
        ),
        compiler_params=pltpu.CompilerParams(
            dimension_semantics=("parallel", "parallel"),
            vmem_limit_bytes=vmem_limit,
        ),
    )(x_flat, x_flat, w_kv, b_kv, w_qt, b_q)

    return out.reshape(B, C, H, W)


# ----------------------------- pure-JAX reference -----------------------------

@jax.jit
def reference_forward(x, params):
    """Direct transcription of Self_Attn.forward (separate convs, un-folded gamma)."""
    B, C, H, W = x.shape
    N = H * W
    xf = x.reshape(B, C, N)
    q = jnp.einsum('oc,bcn->bon', params['wq'], xf) + params['bq'][None, :, None]  # (B, C//8, N)
    k = jnp.einsum('oc,bcn->bon', params['wk'], xf) + params['bk'][None, :, None]
    v = jnp.einsum('oc,bcn->bon', params['wv'], xf) + params['bv'][None, :, None]  # (B, C, N)
    energy = jnp.einsum('bdi,bdj->bij', q, k)                                      # (B, N, N)
    attn = jax.nn.softmax(energy, axis=-1)
    out = jnp.einsum('bcj,bij->bci', v, attn)                                      # (B, C, N)
    out = params['gamma'] * out + xf
    return out.reshape(B, C, H, W)


# ----------------------------- main -----------------------------

if __name__ == "__main__":
    key = jax.random.PRNGKey(0)
    B, C, H, W = 2, 32, 16, 16        # in_dim=32 (>= 8 so in_dim // 8 >= 1), N = 256 -> TQ = 128
    dq = C // 8

    ks = jax.random.split(key, 8)
    bound = 1.0 / float(np.sqrt(C))   # PyTorch Conv2d(kernel_size=1) default init bound

    params = {
        'wq': jax.random.uniform(ks[0], (dq, C), jnp.float32, -bound, bound),
        'bq': jax.random.uniform(ks[1], (dq,), jnp.float32, -bound, bound),
        'wk': jax.random.uniform(ks[2], (dq, C), jnp.float32, -bound, bound),
        'bk': jax.random.uniform(ks[3], (dq,), jnp.float32, -bound, bound),
        'wv': jax.random.uniform(ks[4], (C, C), jnp.float32, -bound, bound),
        'bv': jax.random.uniform(ks[5], (C,), jnp.float32, -bound, bound),
        # The module initializes gamma = 0; use a nonzero value so the attention path is
        # actually exercised by the correctness check.
        'gamma': jnp.float32(0.75),
    }

    x = jax.random.normal(ks[6], (B, C, H, W), jnp.float32)

    out = jax.block_until_ready(self_attn_forward(x, params))
    ref = jax.block_until_ready(reference_forward(x, params))

    # Tolerance budgets for bf16 MXU operands (the XLA reference also runs its f32 matmuls
    # as bf16 MXU passes at default precision) plus the approx EUP reciprocal.
    np.testing.assert_allclose(np.asarray(out), np.asarray(ref), rtol=3e-3, atol=3e-3)

    assert out.shape == (B, C, H, W) and out.dtype == jnp.float32
    print("KERNEL_OK")
</pallas_src>

<mosaic_0001>
module attributes {stable_mosaic.version = 11 : i64} {
  func.func @_self_attn_kernel(%arg0: i32, %arg1: i32, %arg2: memref<1x32x128xf32, #tpu.memory_space<vmem>>, %arg3: memref<1x32x256xf32, #tpu.memory_space<vmem>>, %arg4: memref<49x32xbf16, #tpu.memory_space<vmem>>, %arg5: memref<49x1xf32, #tpu.memory_space<vmem>>, %arg6: memref<32x16xbf16, #tpu.memory_space<vmem>>, %arg7: memref<1x16xf32, #tpu.memory_space<vmem>>, %arg8: memref<1x32x128xf32, #tpu.memory_space<vmem>>) attributes {dimension_semantics = [#tpu.dimension_semantics<parallel>, #tpu.dimension_semantics<parallel>], iteration_bounds = array<i64: 2, 2>, scalar_prefetch = 0 : i64, scratch_operands = 0 : i64, tpu.core_type = #tpu.core_type<tc>, window_params = [{transform_indices = @transform_0, window_bounds = array<i64: 1, 32, 128>}, {transform_indices = @transform_1, window_bounds = array<i64: 1, 32, 256>}, {pipeline_mode = #tpu.pipeline_mode<synchronous>, transform_indices = @transform_2, window_bounds = array<i64: 49, 32>}, {pipeline_mode = #tpu.pipeline_mode<synchronous>, transform_indices = @transform_3, window_bounds = array<i64: 49, 1>}, {pipeline_mode = #tpu.pipeline_mode<synchronous>, transform_indices = @transform_4, window_bounds = array<i64: 32, 16>}, {pipeline_mode = #tpu.pipeline_mode<synchronous>, transform_indices = @transform_5, window_bounds = array<i64: 1, 16>}, {transform_indices = @transform_6, window_bounds = array<i64: 1, 32, 128>}]} {
    %c0 = arith.constant 0 : index
    %c0_0 = arith.constant 0 : index
    %c0_1 = arith.constant 0 : index
    %0 = vector.load %arg2[%c0, %c0_0, %c0_1] : memref<1x32x128xf32, #tpu.memory_space<vmem>>, vector<1x32x128xf32>
    %1 = vector.shape_cast %0 : vector<1x32x128xf32> to vector<32x128xf32>
    %c0_2 = arith.constant 0 : index
    %c0_3 = arith.constant 0 : index
    %c0_4 = arith.constant 0 : index
    %2 = vector.load %arg3[%c0_2, %c0_3, %c0_4] : memref<1x32x256xf32, #tpu.memory_space<vmem>>, vector<1x32x256xf32>
    %3 = vector.shape_cast %2 : vector<1x32x256xf32> to vector<32x256xf32>
    %4 = arith.truncf %1 : vector<32x128xf32> to vector<32x128xbf16>
    %5 = arith.truncf %3 : vector<32x256xf32> to vector<32x256xbf16>
    %c0_5 = arith.constant 0 : index
    %c0_6 = arith.constant 0 : index
    %6 = vector.load %arg4[%c0_5, %c0_6] : memref<49x32xbf16, #tpu.memory_space<vmem>>, vector<49x32xbf16>
    %cst = arith.constant dense<0.000000e+00> : vector<49x256xf32>
    %7 = tpu.matmul %6, %5, %cst {dimension_numbers = #tpu.dot_dimension_numbers<[1], [0], [0], [1], [0, 0, 1, 1], [], []>} : vector<49x32xbf16>, vector<32x256xbf16>, vector<49x256xf32> -> vector<49x256xf32>
    %c0_7 = arith.constant 0 : index
    %c0_8 = arith.constant 0 : index
    %8 = vector.load %arg5[%c0_7, %c0_8] : memref<49x1xf32, #tpu.memory_space<vmem>>, vector<49x1xf32>
    %9 = vector.broadcast %8 : vector<49x1xf32> to vector<49x256xf32>
    %10 = arith.addf %7, %9 : vector<49x256xf32>
    %11 = vector.extract_strided_slice %10 {offsets = [0, 0], sizes = [16, 256], strides = [1, 1]} : vector<49x256xf32> to vector<16x256xf32>
    %12 = arith.truncf %11 : vector<16x256xf32> to vector<16x256xbf16>
    %13 = vector.extract_strided_slice %10 {offsets = [16, 0], sizes = [33, 256], strides = [1, 1]} : vector<49x256xf32> to vector<33x256xf32>
    %14 = arith.truncf %13 : vector<33x256xf32> to vector<33x256xbf16>
    %c0_9 = arith.constant 0 : index
    %c0_10 = arith.constant 0 : index
    %15 = vector.load %arg6[%c0_9, %c0_10] : memref<32x16xbf16, #tpu.memory_space<vmem>>, vector<32x16xbf16>
    %cst_11 = arith.constant dense<0.000000e+00> : vector<128x16xf32>
    %16 = tpu.matmul %4, %15, %cst_11 {dimension_numbers = #tpu.dot_dimension_numbers<[0], [0], [1], [1], [0, 1, 1, 1], [], []>} : vector<32x128xbf16>, vector<32x16xbf16>, vector<128x16xf32> -> vector<128x16xf32>
    %c0_12 = arith.constant 0 : index
    %c0_13 = arith.constant 0 : index
    %17 = vector.load %arg7[%c0_12, %c0_13] : memref<1x16xf32, #tpu.memory_space<vmem>>, vector<1x16xf32>
    %18 = vector.broadcast %17 : vector<1x16xf32> to vector<128x16xf32>
    %19 = arith.addf %16, %18 : vector<128x16xf32>
    %20 = arith.truncf %19 : vector<128x16xf32> to vector<128x16xbf16>
    %cst_14 = arith.constant dense<0.000000e+00> : vector<128x256xf32>
    %21 = tpu.matmul %20, %12, %cst_14 {dimension_numbers = #tpu.dot_dimension_numbers<[1], [0], [0], [1], [0, 0, 1, 1], [], []>} : vector<128x16xbf16>, vector<16x256xbf16>, vector<128x256xf32> -> vector<128x256xf32>
    %cst_15 = arith.constant dense<0xFF800000> : vector<128xf32>
    %22 = vector.multi_reduction <maximumf>, %21, %cst_15 [1] : vector<128x256xf32> to vector<128xf32>
    %23 = vector.shape_cast %22 : vector<128xf32> to vector<128x1xf32>
    %24 = vector.broadcast %23 : vector<128x1xf32> to vector<128x256xf32>
    %25 = arith.subf %21, %24 : vector<128x256xf32>
    %26 = math.exp %25 : vector<128x256xf32>
    %27 = arith.truncf %26 : vector<128x256xf32> to vector<128x256xbf16>
    %cst_16 = arith.constant dense<0.000000e+00> : vector<33x128xf32>
    %28 = tpu.matmul %14, %27, %cst_16 {dimension_numbers = #tpu.dot_dimension_numbers<[1], [1], [0], [0], [0, 0, 1, 0], [], []>} : vector<33x256xbf16>, vector<128x256xbf16>, vector<33x128xf32> -> vector<33x128xf32>
    %29 = vector.extract_strided_slice %28 {offsets = [32, 0], sizes = [1, 128], strides = [1, 1]} : vector<33x128xf32> to vector<1x128xf32>
    %30 = tpu.reciprocal %29 {approx = true} : vector<1x128xf32> -> vector<1x128xf32>
    %31 = vector.extract_strided_slice %28 {offsets = [0, 0], sizes = [32, 128], strides = [1, 1]} : vector<33x128xf32> to vector<32x128xf32>
    %32 = vector.broadcast %30 : vector<1x128xf32> to vector<32x128xf32>
    %33 = arith.mulf %31, %32 : vector<32x128xf32>
    %34 = arith.addf %33, %1 : vector<32x128xf32>
    %c0_17 = arith.constant 0 : index
    %c0_18 = arith.constant 0 : index
    %c0_19 = arith.constant 0 : index
    %35 = vector.load %arg8[%c0_17, %c0_18, %c0_19] : memref<1x32x128xf32, #tpu.memory_space<vmem>>, vector<1x32x128xf32>
    %36 = vector.shape_cast %35 : vector<1x32x128xf32> to vector<32x128xf32>
    %37 = vector.shape_cast %34 : vector<32x128xf32> to vector<1x32x128xf32>
    tpu.vector_store %arg8[%c0_17, %c0_18, %c0_19], %37 {strides = array<i32>} : memref<1x32x128xf32, #tpu.memory_space<vmem>>, vector<1x32x128xf32>,
    return
  }
  func.func @transform_0(%arg0: i32, %arg1: i32) -> (i32, i32, i32) {
    %c0_i32 = arith.constant 0 : i32
    %c0_i32_0 = arith.constant 0 : i32
    return %arg0, %c0_i32, %arg1 : i32, i32, i32
  }
  func.func @transform_1(%arg0: i32, %arg1: i32) -> (i32, i32, i32) {
    %c0_i32 = arith.constant 0 : i32
    %c0_i32_0 = arith.constant 0 : i32
    %c0_i32_1 = arith.constant 0 : i32
    return %arg0, %c0_i32, %c0_i32_0 : i32, i32, i32
  }
  func.func @transform_2(%arg0: i32, %arg1: i32) -> (i32, i32) {
    %c0_i32 = arith.constant 0 : i32
    %c0_i32_0 = arith.constant 0 : i32
    %c0_i32_1 = arith.constant 0 : i32
    return %c0_i32, %c0_i32_0 : i32, i32
  }
  func.func @transform_3(%arg0: i32, %arg1: i32) -> (i32, i32) {
    %c0_i32 = arith.constant 0 : i32
    %c0_i32_0 = arith.constant 0 : i32
    %c0_i32_1 = arith.constant 0 : i32
    return %c0_i32, %c0_i32_0 : i32, i32
  }
  func.func @transform_4(%arg0: i32, %arg1: i32) -> (i32, i32) {
    %c0_i32 = arith.constant 0 : i32
    %c0_i32_0 = arith.constant 0 : i32
    %c0_i32_1 = arith.constant 0 : i32
    return %c0_i32, %c0_i32_0 : i32, i32
  }
  func.func @transform_5(%arg0: i32, %arg1: i32) -> (i32, i32) {
    %c0_i32 = arith.constant 0 : i32
    %c0_i32_0 = arith.constant 0 : i32
    %c0_i32_1 = arith.constant 0 : i32
    return %c0_i32, %c0_i32_0 : i32, i32
  }
  func.func @transform_6(%arg0: i32, %arg1: i32) -> (i32, i32, i32) {
    %c0_i32 = arith.constant 0 : i32
    %c0_i32_0 = arith.constant 0 : i32
    return %arg0, %c0_i32, %arg1 : i32, i32, i32
  }
}

</mosaic_0001>

<llo_original>
// kernel: self_attn_forward.1
$region0: #{self_attn_forward.1}
  #allocation0 [shape = 'u32[]', space=smem, size = 0x4, offset = 0x4, fixed_abs, tag = 'smem constant byte address 0x4 - core index']
  #allocation1 [shape = 'u32[144,128]{1,0:T(1,128)}', space=vmem, size = 0x12000, scoped, tag = 'internal scratch']
  %s0 = inlined_call_operand.vmem [shape: f32[2,32,256], index: 0, kind: input, shape index: {}, may-alias: {0,1}]
  %s1 = inlined_call_operand.vmem [shape: f32[2,32,256], index: 1, kind: input, shape index: {}, may-alias: {0,1}]
  %s2 = inlined_call_operand.vmem [shape: bf16[49,32], index: 2, kind: input, shape index: {}]
  %s3 = inlined_call_operand.vmem [shape: f32[49,1], index: 3, kind: input, shape index: {}]
  %s4 = inlined_call_operand.vmem [shape: bf16[32,16], index: 4, kind: input, shape index: {}]
  %s5 = inlined_call_operand.vmem [shape: f32[1,16], index: 5, kind: input, shape index: {}]
  %s6 = inlined_call_operand.vmem [shape: f32[2,32,256], index: 6, kind: output, shape index: {}]
  %s7 = sld [smem:[#allocation0]]
  $region129: #{self_attn_forward.1} parent=0
    _
  %s9 = ssub.s32 1, %s7
  %s10 = scalar_select 0, %s9, %s7
  $region1: #{self_attn_forward.1} parent=0
    #allocation2 [shape = 'u8[32768]{0}', space=vmem, size = 0x8000, scoped, tag = 'input window, operand 0']
    #allocation3 [shape = 'u8[32768]{0}', space=vmem, size = 0x8000, scoped, tag = 'output window, operand 0']
    loop: start=0, step=1, limit=6
    $region2: #{self_attn_forward.1} parent=1 // loop_pre_header
      _
    $region3: #{self_attn_forward.1} parent=1 // loop_header
      %s12 = sphi 0, %s16
      %p13 = scmp.ge.s32.totalorder %s12, 6
      %s19 = sphi 0, %s31
      %s20 = sphi 0, %s27
      %s21 = sphi 0, %s19
      %s22 = sphi 0, %s20
      %s23 = sphi 0, %s21
      %s24 = sphi 0, %s22
      %s36 = sphi 0, %s38
      %s39 = sphi 0, %s36
      %s40 = sphi 0, %s39
      %s56 = sphi 0, %s40
      %s62 = sphi 0, %s64
      %s65 = sphi 0, %s62
      %s66 = sphi 0, %s65
      %s82 = sphi 0, %s66
      %s86 = sphi 0, %s86
      %s88 = sphi 0, %s86
      %s89 = sphi 0, %s88
      %s103 = sphi 0, %s89
      %s107 = sphi 0, %s107
      %s109 = sphi 0, %s107
      %s110 = sphi 0, %s109
      %s124 = sphi 0, %s110
      %s128 = sphi 0, %s128
      %s130 = sphi 0, %s128
      %s131 = sphi 0, %s130
      %s145 = sphi 0, %s131
      %s149 = sphi 0, %s149
      %s151 = sphi 0, %s149
      %s152 = sphi 0, %s151
      %s166 = sphi 0, %s152
      %s174 = sphi 0, %s176
      %s177 = sphi 0, %s174
      %s178 = sphi 0, %s177
      %s194 = sphi 0, %s178
    $region4: #{self_attn_forward.1} parent=1 // loop_header_branch
      %15 = sbr.rel (%p13) target = $region8
    $region5: #{self_attn_forward.1} parent=1 // loop_body
      %s17 = ssub.s32 %s12, 1
      %s18 = ssub.s32 %s12, 2
      %s25 = sadd.s32 1, %s20
      %p26 = scmp.ge.s32.totalorder %s25, 2
      %s27 = scalar_select %p26, 0, %s25
      %s28 = sadd.s32 1, %s19
      %s29 = scalar_select %p26, %s28, %s19
      %p30 = scmp.ge.s32.totalorder %s29, 2
      %s31 = scalar_select %p30, 0, %s29
      %s32 = ssub.s32 %s19, %s31
      %s33 = ssub.s32 %s20, %s27
      %s34 = sor.u32 %s32, %s33
      %p35 = scmp.eq.s32.totalorder %s34, 0
      %s37 = sadd.s32 %s36, 1
      %s38 = scalar_select %p35, %s36, %s37
      %p41 = pneg %p35
      %p42 = scmp.eq.s32.totalorder %s12, 3
      %p43 = por %p41, %p42
      %p44 = scmp.ne.s32.totalorder %s36, %s39
      %p45 = scmp.eq.s32.totalorder %s12, 0
      %p46 = por %p44, %p45
      %p47 = scmp.ne.s32.totalorder %s36, %s39
      %p48 = scmp.eq.s32.totalorder %s17, 3
      %p49 = por %p47, %p48
      %p50 = scmp.ne.s32.totalorder %s39, %s40
      %p51 = scmp.eq.s32.totalorder %s17, 0
      %p52 = por %p50, %p51
      %p53 = scmp.ne.s32.totalorder %s39, %s40
      %p54 = scmp.eq.s32.totalorder %s18, 3
      %p55 = por %p53, %p54
      %p57 = scmp.ne.s32.totalorder %s40, %s56
      %p58 = scmp.eq.s32.totalorder %s18, 0
      %p59 = por %p57, %p58
      %s60 = ssub.s32 %s19, %s31
      %p61 = scmp.eq.s32.totalorder %s60, 0
      %s63 = sadd.s32 %s62, 1
      %s64 = scalar_select %p61, %s62, %s63
      %p67 = pneg %p61
      %p68 = scmp.eq.s32.totalorder %s12, 3
      %p69 = por %p67, %p68
      %p70 = scmp.ne.s32.totalorder %s62, %s65
      %p71 = scmp.eq.s32.totalorder %s12, 0
      %p72 = por %p70, %p71
      %p73 = scmp.ne.s32.totalorder %s62, %s65
      %p74 = scmp.eq.s32.totalorder %s17, 3
      %p75 = por %p73, %p74
      %p76 = scmp.ne.s32.totalorder %s65, %s66
      %p77 = scmp.eq.s32.totalorder %s17, 0
      %p78 = por %p76, %p77
      %p79 = scmp.ne.s32.totalorder %s65, %s66
      %p80 = scmp.eq.s32.totalorder %s18, 3
      %p81 = por %p79, %p80
      %p83 = scmp.ne.s32.totalorder %s66, %s82
      %p84 = scmp.eq.s32.totalorder %s18, 0
      %p85 = por %p83, %p84
      %s87 = sadd.s32 %s86, 1
      %p90 = scmp.eq.s32.totalorder %s12, 3
      %p91 = scmp.ne.s32.totalorder %s86, %s88
      %p92 = scmp.eq.s32.totalorder %s12, 0
      %p93 = por %p91, %p92
      %p94 = scmp.ne.s32.totalorder %s86, %s88
      %p95 = scmp.eq.s32.totalorder %s17, 3
      %p96 = por %p94, %p95
      %p97 = scmp.ne.s32.totalorder %s88, %s89
      %p98 = scmp.eq.s32.totalorder %s17, 0
      %p99 = por %p97, %p98
      %p100 = scmp.ne.s32.totalorder %s88, %s89
      %p101 = scmp.eq.s32.totalorder %s18, 3
      %p102 = por %p100, %p101
      %p104 = scmp.ne.s32.totalorder %s89, %s103
      %p105 = scmp.eq.s32.totalorder %s18, 0
      %p106 = por %p104, %p105
      %s108 = sadd.s32 %s107, 1
      %p111 = scmp.eq.s32.totalorder %s12, 3
      %p112 = scmp.ne.s32.totalorder %s107, %s109
      %p113 = scmp.eq.s32.totalorder %s12, 0
      %p114 = por %p112, %p113
      %p115 = scmp.ne.s32.totalorder %s107, %s109
      %p116 = scmp.eq.s32.totalorder %s17, 3
      %p117 = por %p115, %p116
      %p118 = scmp.ne.s32.totalorder %s109, %s110
      %p119 = scmp.eq.s32.totalorder %s17, 0
      %p120 = por %p118, %p119
      %p121 = scmp.ne.s32.totalorder %s109, %s110
      %p122 = scmp.eq.s32.totalorder %s18, 3
      %p123 = por %p121, %p122
      %p125 = scmp.ne.s32.totalorder %s110, %s124
      %p126 = scmp.eq.s32.totalorder %s18, 0
      %p127 = por %p125, %p126
      %s129 = sadd.s32 %s128, 1
      %p132 = scmp.eq.s32.totalorder %s12, 3
      %p133 = scmp.ne.s32.totalorder %s128, %s130
      %p134 = scmp.eq.s32.totalorder %s12, 0
      %p135 = por %p133, %p134
      %p136 = scmp.ne.s32.totalorder %s128, %s130
      %p137 = scmp.eq.s32.totalorder %s17, 3
      %p138 = por %p136, %p137
      %p139 = scmp.ne.s32.totalorder %s130, %s131
      %p140 = scmp.eq.s32.totalorder %s17, 0
      %p141 = por %p139, %p140
      %p142 = scmp.ne.s32.totalorder %s130, %s131
      %p143 = scmp.eq.s32.totalorder %s18, 3
      %p144 = por %p142, %p143
      %p146 = scmp.ne.s32.totalorder %s131, %s145
      %p147 = scmp.eq.s32.totalorder %s18, 0
      %p148 = por %p146, %p147
      %s150 = sadd.s32 %s149, 1
      %p153 = scmp.eq.s32.totalorder %s12, 3
      %p154 = scmp.ne.s32.totalorder %s149, %s151
      %p155 = scmp.eq.s32.totalorder %s12, 0
      %p156 = por %p154, %p155
      %p157 = scmp.ne.s32.totalorder %s149, %s151
      %p158 = scmp.eq.s32.totalorder %s17, 3
      %p159 = por %p157, %p158
      %p160 = scmp.ne.s32.totalorder %s151, %s152
      %p161 = scmp.eq.s32.totalorder %s17, 0
      %p162 = por %p160, %p161
      %p163 = scmp.ne.s32.totalorder %s151, %s152
      %p164 = scmp.eq.s32.totalorder %s18, 3
      %p165 = por %p163, %p164
      %p167 = scmp.ne.s32.totalorder %s152, %s166
      %p168 = scmp.eq.s32.totalorder %s18, 0
      %p169 = por %p167, %p168
      %s170 = ssub.s32 %s19, %s31
      %s171 = ssub.s32 %s20, %s27
      %s172 = sor.u32 %s170, %s171
      %p173 = scmp.eq.s32.totalorder %s172, 0
      %s175 = sadd.s32 %s174, 1
      %s176 = scalar_select %p173, %s174, %s175
      %p179 = pneg %p173
      %p180 = scmp.eq.s32.totalorder %s12, 3
      %p181 = por %p179, %p180
      %p182 = scmp.ne.s32.totalorder %s174, %s177
      %p183 = scmp.eq.s32.totalorder %s12, 0
      %p184 = por %p182, %p183
      %p185 = scmp.ne.s32.totalorder %s174, %s177
      %p186 = scmp.eq.s32.totalorder %s17, 3
      %p187 = por %p185, %p186
      %p188 = scmp.ne.s32.totalorder %s177, %s178
      %p189 = scmp.eq.s32.totalorder %s17, 0
      %p190 = por %p188, %p189
      %p191 = scmp.ne.s32.totalorder %s177, %s178
      %p192 = scmp.eq.s32.totalorder %s18, 3
      %p193 = por %p191, %p192
      %p195 = scmp.ne.s32.totalorder %s178, %s194
      %p196 = scmp.eq.s32.totalorder %s18, 0
      %p197 = por %p195, %p196
      %p198 = scmp.le.s32.totalorder 1, %s12
      %p199 = scmp.lt.s32.totalorder %s12, 5
      %p200 = pnand %p198, %p199
      %p201 = pneg %p200
      // Predicated region
      $region9: #{self_attn_forward.1} parent=5 // pred_check
        _
      $region10: #{self_attn_forward.1} parent=5 // pred_check_branch
        %203 = sbr.rel (%p200) target = $region12
      $region11: #{self_attn_forward.1} parent=5 // pred_region
        %s204 = ssub.s32 %s12, 1
        // Predicated region
        $region13: #{self_attn_forward.1} parent=11 // pred_check
          %p205 = pneg %p99
        $region14: #{self_attn_forward.1} parent=11 // pred_check_branch
          %207 = sbr.rel (%p205) target = $region16
        $region15: #{self_attn_forward.1} parent=11 // pred_region
          _
        $region16: #{self_attn_forward.1} parent=11 // pred_fallthru
          _
        // Predicated region
        $region17: #{self_attn_forward.1} parent=11 // pred_check
          %p208 = pneg %p120
        $region18: #{self_attn_forward.1} parent=11 // pred_check_branch
          %210 = sbr.rel (%p208) target = $region20
        $region19: #{self_attn_forward.1} parent=11 // pred_region
          _
        $region20: #{self_attn_forward.1} parent=11 // pred_fallthru
          _
        // Predicated region
        $region21: #{self_attn_forward.1} parent=11 // pred_check
          %p211 = pneg %p141
        $region22: #{self_attn_forward.1} parent=11 // pred_check_branch
          %213 = sbr.rel (%p211) target = $region24
        $region23: #{self_attn_forward.1} parent=11 // pred_region
          _
        $region24: #{self_attn_forward.1} parent=11 // pred_fallthru
          _
        // Predicated region
        $region25: #{self_attn_forward.1} parent=11 // pred_check
          %p214 = pneg %p162
        $region26: #{self_attn_forward.1} parent=11 // pred_check_branch
          %216 = sbr.rel (%p214) target = $region28
        $region27: #{self_attn_forward.1} parent=11 // pred_region
          _
        $region28: #{self_attn_forward.1} parent=11 // pred_fallthru
          _
      $region12: #{self_attn_forward.1} parent=5 // pred_fallthru
        _
      %p217 = scmp.lt.s32.totalorder %s12, 4
      // Predicated region
      $region29: #{self_attn_forward.1} parent=5 // pred_check
        %p218 = pneg %p217
      $region30: #{self_attn_forward.1} parent=5 // pred_check_branch
        %220 = sbr.rel (%p218) target = $region32
      $region31: #{self_attn_forward.1} parent=5 // pred_region
        // Predicated region
        $region33: #{self_attn_forward.1} parent=31 // pred_check
          %p221 = pneg %p46
        $region34: #{self_attn_forward.1} parent=31 // pred_check_branch
          %223 = sbr.rel (%p221) target = $region36
        $region35: #{self_attn_forward.1} parent=31 // pred_region
          %s224 = sand.u32 %s36, 1
          %s225 = sand.u32 %s36, 1
          %s226 = smul.addr %s225, 32
          %s227 = scalar_lea.vmem [#allocation2], %s226
          %s228 = smul.addr %s19, 8
          %s229 = sadd.s32 %s20, %s228
          %s230 = smul.addr %s229, 8
          %s231 = scalar_lea.vmem %s0, %s230
          // Predicated region
          $region37: #{self_attn_forward.1} parent=35 // pred_check
            _
          $region38: #{self_attn_forward.1} parent=35 // pred_check_branch
            %233 = sbr.rel (0) target = $region40
          $region39: #{self_attn_forward.1} parent=35 // pred_region
            // Predicated region
            $region41: #{self_attn_forward.1} parent=39 // pred_check
              _
            $region42: #{self_attn_forward.1} parent=39 // pred_check_branch
              %235 = sbr.rel (0) target = $region44
            $region43: #{self_attn_forward.1} parent=39 // pred_region
              // Predicated region
              $region56: #{self_attn_forward.1} parent=43 // pred_check
                _
              $region57: #{self_attn_forward.1} parent=43 // pred_check_branch
                %256 = sbr.rel (0) target = $region59
              $region58: #{self_attn_forward.1} parent=43 // pred_region
                loop: start=0, step=1, limit=1
                $region60: #{self_attn_forward.1} parent=58 // loop_pre_header
                  _
                $region61: #{self_attn_forward.1} parent=58 // loop_header
                  %s258 = sphi 0, %s262
                  %p259 = scmp.ge.s32.totalorder %s258, 1
                  %s263 = sphi %s231, %s231
                  %s264 = sphi %s227, %s227
                $region62: #{self_attn_forward.1} parent=58 // loop_header_branch
                  %261 = sbr.rel (%p259) target = $region66
                $region63: #{self_attn_forward.1} parent=58 // loop_body
                  %v265 = vld [vmem:[%s263] sm:$0xff]
                  %266 = vst [vmem:[%s264] sm:$0xff] %v265
                  %v267 = vld [vmem:[%s263 + $0x10] sm:$0xff]
                  %268 = vst [vmem:[%s264 + $0x8] sm:$0xff] %v267
                  %v269 = vld [vmem:[%s263 + $0x20] sm:$0xff]
                  %270 = vst [vmem:[%s264 + $0x10] sm:$0xff] %v269
                  %v271 = vld [vmem:[%s263 + $0x30] sm:$0xff]
                  %272 = vst [vmem:[%s264 + $0x18] sm:$0xff] %v271
                $region64: #{self_attn_forward.1} parent=58 // loop_footer
                  %s262 = sadd.s32 1, %s258
                $region65: #{self_attn_forward.1} parent=58 // loop_footer_branch
                  %257 = sbr.rel target = $region61
                $region66: #{self_attn_forward.1} parent=58 // loop_exit
                  _
              $region59: #{self_attn_forward.1} parent=43 // pred_fallthru
                _
              // Predicated region
              $region67: #{self_attn_forward.1} parent=43 // pred_check
                _
              $region68: #{self_attn_forward.1} parent=43 // pred_check_branch
                %274 = sbr.rel target = $region70
              $region69: #{self_attn_forward.1} parent=43 // pred_region
                _
              $region70: #{self_attn_forward.1} parent=43 // pred_fallthru
                _
            $region44: #{self_attn_forward.1} parent=39 // pred_fallthru
              _
            // Predicated region
            $region45: #{self_attn_forward.1} parent=39 // pred_check
              _
            $region46: #{self_attn_forward.1} parent=39 // pred_check_branch
              %237 = sbr.rel target = $region48
            $region47: #{self_attn_forward.1} parent=39 // pred_region
              loop: start=0, step=1, limit=1
              $region49: #{self_attn_forward.1} parent=47 // loop_pre_header
                _
              $region50: #{self_attn_forward.1} parent=47 // loop_header
                %s240 = sphi 0, %s244
                %p241 = scmp.ge.s32.totalorder %s240, 1
                %s245 = sphi %s231, %s231
                %s246 = sphi %s227, %s227
              $region51: #{self_attn_forward.1} parent=47 // loop_header_branch
                %243 = sbr.rel (%p241) target = $region55
              $region52: #{self_attn_forward.1} parent=47 // loop_body
                %v247 = vld [vmem:[%s245] sm:$0xff]
                %248 = vst [vmem:[%s246] sm:$0xff] %v247
                %v249 = vld [vmem:[%s245 + $0x10] sm:$0xff]
                %250 = vst [vmem:[%s246 + $0x8] sm:$0xff] %v249
                %v251 = vld [vmem:[%s245 + $0x20] sm:$0xff]
                %252 = vst [vmem:[%s246 + $0x10] sm:$0xff] %v251
                %v253 = vld [vmem:[%s245 + $0x30] sm:$0xff]
                %254 = vst [vmem:[%s246 + $0x18] sm:$0xff] %v253
              $region53: #{self_attn_forward.1} parent=47 // loop_footer
                %s244 = sadd.s32 1, %s240
              $region54: #{self_attn_forward.1} parent=47 // loop_footer_branch
                %239 = sbr.rel target = $region50
              $region55: #{self_attn_forward.1} parent=47 // loop_exit
                _
            $region48: #{self_attn_forward.1} parent=39 // pred_fallthru
              _
          $region40: #{self_attn_forward.1} parent=35 // pred_fallthru
            _
          %275 = vnop
        $region36: #{self_attn_forward.1} parent=31 // pred_fallthru
          _
        // Predicated region
        $region71: #{self_attn_forward.1} parent=31 // pred_check
          %p276 = pneg %p72
        $region72: #{self_attn_forward.1} parent=31 // pred_check_branch
          %278 = sbr.rel (%p276) target = $region74
        $region73: #{self_attn_forward.1} parent=31 // pred_region
          %p279 = scmp.lt.s32.totalorder %s19, 1
          %s280 = scalar_select %p279, %s19, 1
          %s281 = smul.addr %s280, 8
          %s282 = smul.addr %s281, 8
          %s283 = scalar_lea.vmem %s1, %s282
        $region74: #{self_attn_forward.1} parent=31 // pred_fallthru
          _
      $region32: #{self_attn_forward.1} parent=5 // pred_fallthru
        _
      %p284 = scmp.le.s32.totalorder 1, %s12
      %p285 = scmp.lt.s32.totalorder %s12, 5
      %p286 = pnand %p284, %p285
      %p287 = pneg %p286
      // Predicated region
      $region75: #{self_attn_forward.1} parent=5 // pred_check
        _
      $region76: #{self_attn_forward.1} parent=5 // pred_check_branch
        %289 = sbr.rel (%p286) target = $region78
      $region77: #{self_attn_forward.1} parent=5 // pred_region
        %s290 = ssub.s32 %s12, 1
        %s291 = sand.u32 %s39, 1
        %s292 = sand.u32 %s39, 1
        %s293 = smul.addr %s292, 32
        %s294 = scalar_lea.vmem [#allocation2], %s293
        // Predicated region
        $region79: #{self_attn_forward.1} parent=77 // pred_check
          %p295 = pneg %p52
        $region80: #{self_attn_forward.1} parent=77 // pred_check_branch
          %297 = sbr.rel (%p295) target = $region82
        $region81: #{self_attn_forward.1} parent=77 // pred_region
          _
        $region82: #{self_attn_forward.1} parent=77 // pred_fallthru
          _
        %s298 = sand.u32 %s39, 1
        %s299 = sand.u32 %s39, 1
        %s300 = smul.addr %s299, 32
        %s301 = scalar_lea.vmem [#allocation2], %s300
        %p302 = pneg %p52
        %p303 = pneg %p49
        %p304 = scmp.lt.s32.totalorder %s21, 1
        %s305 = scalar_select %p304, %s21, 1
        %s306 = smul.addr %s305, 8
        %s307 = smul.addr %s306, 8
        %s308 = scalar_lea.vmem %s1, %s307
        %p309 = pneg %p78
        %p310 = pneg %p75
        %p311 = pneg %p99
        %p312 = pneg %p96
        %p313 = pneg %p120
        %p314 = pneg %p117
        %p315 = pneg %p141
        %p316 = pneg %p138
        %p317 = pneg %p162
        %p318 = pneg %p159
        %p319 = pneg %p190
        %p320 = pneg %p187
        %s321 = sand.u32 %s177, 1
        %s322 = sand.u32 %s177, 1
        %s323 = smul.addr %s322, 32
        %s324 = scalar_lea.vmem [#allocation3], %s323
        %p325 = scmp.lt.s32.totalorder %s21, 1
        %s326 = scalar_select %p325, %s21, 1
        %s327 = smul.addr %s326, 8
        %s328 = smul.addr %s327, 8
        %s329 = scalar_lea.vmem %s1, %s328
        %v331 = vld [vmem:[%s294] sm:$0xff]
        %v332 = vld [vmem:[%s294 + $0x8] sm:$0xff]
        %v333 = vld [vmem:[%s294 + $0x10] sm:$0xff]
        %v334 = vld [vmem:[%s294 + $0x18] sm:$0xff]
        %v335 = vld [vmem:[%s329] sm:$0xff]
        %v336 = vld [vmem:[%s329 + $0x8] sm:$0xff]
        %v337 = vld [vmem:[%s329 + $0x10] sm:$0xff]
        %v338 = vld [vmem:[%s329 + $0x18] sm:$0xff]
        %v339 = vld [vmem:[%s329 + $0x20] sm:$0xff]
        %v340 = vld [vmem:[%s329 + $0x28] sm:$0xff]
        %v341 = vld [vmem:[%s329 + $0x30] sm:$0xff]
        %v342 = vld [vmem:[%s329 + $0x38] sm:$0xff]
        %v343 = vpack.c.bf16 %v332, %v331
        %v344 = vpack.c.bf16 %v334, %v333
        %v345 = vpack.c.bf16 %v337, %v335
        %v346 = vpack.c.bf16 %v338, %v336
        %v347 = vpack.c.bf16 %v341, %v339
        %v348 = vpack.c.bf16 %v342, %v340
        %v349 = vld [vmem:[%s2] sm:$0xf]
        %v350 = vld [vmem:[%s2 + $0x4] sm:$0xf]
        %v351 = vld [vmem:[%s2 + $0x8] sm:$0xf]
        %v352 = vld [vmem:[%s2 + $0xc] sm:$0xf]
        %v353 = vld [vmem:[%s2 + $0x10] sm:$0xf]
        %v354 = vld [vmem:[%s2 + $0x14] sm:$0xf]
        %v355 = vld [vmem:[%s2 + $0x18] sm:$0x1]
        %v356 = vld [vmem:[%s3] sm:$0xff]
        %v357 = vld [vmem:[%s3 + $0x8] sm:$0xff]
        %v358 = vld [vmem:[%s3 + $0x10] sm:$0xff]
        %v359 = vld [vmem:[%s3 + $0x18] sm:$0xff]
        %v360 = vld [vmem:[%s3 + $0x20] sm:$0xff]
        %v361 = vld [vmem:[%s3 + $0x28] sm:$0xff]
        %v362 = vld [vmem:[%s3 + $0x30] sm:$0x1]
        %364 = vset.pattern.permute.xlu0 0
        %365 = vperm.xlu0 %364, %v356
        %v366 = vpop.permute.xlu0 %365
        %369 = vset.pattern.permute.xlu0 0
        %370 = vperm.xlu0 %369, %v357
        %v371 = vpop.permute.xlu0 %370
        %374 = vset.pattern.permute.xlu0 0
        %375 = vperm.xlu0 %374, %v358
        %v376 = vpop.permute.xlu0 %375
        %379 = vset.pattern.permute.xlu0 0
        %380 = vperm.xlu0 %379, %v359
        %v381 = vpop.permute.xlu0 %380
        %384 = vset.pattern.permute.xlu0 0
        %385 = vperm.xlu0 %384, %v360
        %v386 = vpop.permute.xlu0 %385
        %389 = vset.pattern.permute.xlu0 0
        %390 = vperm.xlu0 %389, %v361
        %v391 = vpop.permute.xlu0 %390
        %394 = vset.pattern.permute.xlu0 0
        %395 = vperm.xlu0 %394, %v362
        %v396 = vpop.permute.xlu0 %395
        %v405 = vunpack.c.l.b16 %v349
        %v406 = vunpack.c.l.b16 %v350
        %v407 = vunpack.c.l.b16 %v351
        %v408 = vunpack.c.l.b16 %v352
        %v409 = vunpack.c.l.b16 %v353
        %v410 = vunpack.c.l.b16 %v354
        %v411 = vunpack.c.l.b16 %v355
        %v412 = vpack.c.b16 %v406, %v405
        %v413 = vpack.c.b16 %v408, %v407
        %v414 = vpack.c.b16 %v410, %v409
        %v415 = vpack.c.b16 %v411, %v411
        %vm416 = vcmask 261120
        %v418 = vsel %vm416, %v412, 0
        %v421 = vsel %vm416, %v413, 0
        %v424 = vsel %vm416, %v414, 0
        %v427 = vsel %vm416, %v415, 0
        %429 = vmatprep.subr.bf16.mxu0 %v346
        %430 = vmatpush1.bf16.msra.mxu0 %v345
        %431 = vmatprep.subr.bf16.mxu0 %v348
        %432 = vmatpush1.bf16.msra.mxu0 %v347
        %433 = vmatprep.subr.bf16.mxu0 0
        %434 = vmatpush1.bf16.msra.mxu0 0
        %435 = vmatprep.subr.bf16.mxu0 0
        %436 = vmatpush1.bf16.msra.mxu0 0
        %437 = vmatprep.subr.bf16.mxu0 0
        %438 = vmatpush1.bf16.msra.mxu0 0
        %439 = vmatprep.subr.bf16.mxu0 0
        %440 = vmatpush1.bf16.msra.mxu0 0
        %441 = vmatprep.subr.bf16.mxu0 0
        %442 = vmatpush1.bf16.msra.mxu0 0
        %443 = vmatprep.subr.bf16.mxu0 0
        %444 = vmatpush1.bf16.msra.mxu0 0
        %445 = vmatprep.subr.bf16.mxu0 0
        %446 = vmatpush1.bf16.msra.mxu0 0
        %447 = vmatprep.subr.bf16.mxu0 0
        %448 = vmatpush1.bf16.msra.mxu0 0
        %449 = vmatprep.subr.bf16.mxu0 0
        %450 = vmatpush1.bf16.msra.mxu0 0
        %451 = vmatprep.subr.bf16.mxu0 0
        %452 = vmatpush1.bf16.msra.mxu0 0
        %453 = vmatprep.subr.bf16.mxu0 0
        %454 = vmatpush1.bf16.msra.mxu0 0
        %455 = vmatprep.subr.bf16.mxu0 0
        %456 = vmatpush1.bf16.msra.mxu0 0
        %457 = vmatprep.subr.bf16.mxu0 0
        %458 = vmatpush1.bf16.msra.mxu0 0
        %459 = vmatprep.subr.bf16.mxu0 0
        %460 = vmatpush1.bf16.msra.mxu0 0
        %461 = vmatprep.mubr.bf16.mxu0 0
        %462 = vmatmul.mubr.bf16.gmra.mrb[0].mxu0 %v418
        %v463 = vpop.f32.mrb[0].mxu0
        %v464 = vadd.f32 %v366, %v463
        %v465 = vpop.f32.mrb[0].mxu0
        %v466 = vadd.f32 %v366, %v465
        %v467 = vpop.f32.mrb[0].mxu0
        %v468 = vadd.f32 %v371, %v467
        %v469 = vpop.f32.mrb[0].mxu0
        %v470 = vadd.f32 %v371, %v469
        %471 = vmatprep.mubr.bf16.mxu0 0
        %472 = vmatmul.mubr.bf16.gmra.mrb[0].mxu0 %v421
        %v473 = vpop.f32.mrb[0].mxu0
        %v474 = vadd.f32 %v376, %v473
        %v475 = vpop.f32.mrb[0].mxu0
        %v476 = vadd.f32 %v376, %v475
        %v477 = vpop.f32.mrb[0].mxu0
        %v478 = vadd.f32 %v381, %v477
        %v479 = vpop.f32.mrb[0].mxu0
        %v480 = vadd.f32 %v381, %v479
        %481 = vmatprep.mubr.bf16.mxu0 0
        %482 = vmatmul.mubr.bf16.gmra.mrb[0].mxu0 %v424
        %v483 = vpop.f32.mrb[0].mxu0
        %v484 = vadd.f32 %v386, %v483
        %v485 = vpop.f32.mrb[0].mxu0
        %v486 = vadd.f32 %v386, %v485
        %v487 = vpop.f32.mrb[0].mxu0
        %v488 = vadd.f32 %v391, %v487
        %v489 = vpop.f32.mrb[0].mxu0
        %v490 = vadd.f32 %v391, %v489
        %491 = vmatprep.mubr.bf16.mxu0 0
        %492 = vmatmul.mubr.bf16.gmra.mrb[0].mxu0 %v427
        %v493 = vpop.f32.mrb[0].mxu0
        %v494 = vadd.f32 %v396, %v493
        %v495 = vpop.f32.mrb[0].mxu0
        %v496 = vadd.f32 %v396, %v495
        %v497 = vpop.f32.mrb[0].mxu0
        %v498 = vpop.f32.mrb[0].mxu0
        %499 = vdwg.mxu0
        %v500 = vpack.c.bf16 %v468, %v464
        %v501 = vpack.c.bf16 %v470, %v466
        %v502 = vpack.c.bf16 %v478, %v474
        %v503 = vpack.c.bf16 %v480, %v476
        %v504 = vpack.c.bf16 %v488, %v484
        %v505 = vpack.c.bf16 %v490, %v486
        %v506 = vpack.c.bf16 %v494, %v494
        %v507 = vpack.c.bf16 %v496, %v496
        %v508 = vld [vmem:[%s4] sm:$0xf]
        %v509 = vld [vmem:[%s4 + $0x4] sm:$0xf]
        %v510 = vld [vmem:[%s4 + $0x8] sm:$0xf]
        %v511 = vld [vmem:[%s4 + $0xc] sm:$0xf]
        %v512 = vld [vmem:[%s5] sm:$0x1]
        %v514 = vlaneseq
        %v515 = vshrl.u32 %v514, 7
        %v516 = vsub.s32 0, %v515
        %v517 = vrot.slane %v512, %v516
        %519 = vxpose.xlu0.c.b16.start [1/8] %v343, 128
        %520 = vxpose.xlu0.c.b16.cont [2/8] %v344, 128
        %521 = vxpose.xlu0.c.b16.cont [3/8] 0, 128
        %522 = vxpose.xlu0.c.b16.cont [4/8] 0, 128
        %523 = vxpose.xlu0.c.b16.cont [5/8] 0, 128
        %524 = vxpose.xlu0.c.b16.cont [6/8] 0, 128
        %525 = vxpose.xlu0.c.b16.cont [7/8] 0, 128
        %526 = vxpose.xlu0.c.b16.end [8/8] 0, 128
        %v527 = vpop.trf.xlu0
        %v528 = vpop.trf.xlu0
        %v529 = vpop.trf.xlu0
        %v530 = vpop.trf.xlu0
        %v531 = vpop.trf.xlu0
        %v532 = vpop.trf.xlu0
        %v533 = vpop.trf.xlu0
        %v534 = vpop.trf.xlu0
        %v539 = vunpack.c.l.b16 %v508
        %v540 = vunpack.c.l.b16 %v509
        %v541 = vunpack.c.l.b16 %v510
        %v542 = vunpack.c.l.b16 %v511
        %v543 = vpack.c.b16 %v540, %v539
        %v544 = vpack.c.b16 %v542, %v541
        %v548 = vsel %vm416, %v527, 0
        %v551 = vsel %vm416, %v528, 0
        %v554 = vsel %vm416, %v529, 0
        %v557 = vsel %vm416, %v530, 0
        %v560 = vsel %vm416, %v531, 0
        %v563 = vsel %vm416, %v532, 0
        %v566 = vsel %vm416, %v533, 0
        %v569 = vsel %vm416, %v534, 0
        %571 = vmatprep.subr.bf16.mxu0 0
        %572 = vmatpush1.bf16.msra.mxu0 %v543
        %573 = vmatprep.subr.bf16.mxu0 0
        %574 = vmatpush1.bf16.msra.mxu0 %v544
        %575 = vmatprep.subr.bf16.mxu0 0
        %576 = vmatpush1.bf16.msra.mxu0 0
        %577 = vmatprep.subr.bf16.mxu0 0
        %578 = vmatpush1.bf16.msra.mxu0 0
        %579 = vmatprep.subr.bf16.mxu0 0
        %580 = vmatpush1.bf16.msra.mxu0 0
        %581 = vmatprep.subr.bf16.mxu0 0
        %582 = vmatpush1.bf16.msra.mxu0 0
        %583 = vmatprep.subr.bf16.mxu0 0
        %584 = vmatpush1.bf16.msra.mxu0 0
        %585 = vmatprep.subr.bf16.mxu0 0
        %586 = vmatpush1.bf16.msra.mxu0 0
        %587 = vmatprep.subr.bf16.mxu0 0
        %588 = vmatpush1.bf16.msra.mxu0 0
        %589 = vmatprep.subr.bf16.mxu0 0
        %590 = vmatpush1.bf16.msra.mxu0 0
        %591 = vmatprep.subr.bf16.mxu0 0
        %592 = vmatpush1.bf16.msra.mxu0 0
        %593 = vmatprep.subr.bf16.mxu0 0
        %594 = vmatpush1.bf16.msra.mxu0 0
        %595 = vmatprep.subr.bf16.mxu0 0
        %596 = vmatpush1.bf16.msra.mxu0 0
        %597 = vmatprep.subr.bf16.mxu0 0
        %598 = vmatpush1.bf16.msra.mxu0 0
        %599 = vmatprep.subr.bf16.mxu0 0
        %600 = vmatpush1.bf16.msra.mxu0 0
        %601 = vmatprep.subr.bf16.mxu0 0
        %602 = vmatpush1.bf16.msra.mxu0 0
        %603 = vmatprep.mubr.bf16.mxu0 0
        %604 = vmatmul.mubr.bf16.gmra.mrb[0].mxu0 %v548
        %v605 = vpop.f32.mrb[0].mxu0
        %v606 = vadd.f32 %v517, %v605
        %v607 = vpop.f32.mrb[0].mxu0
        %v608 = vpop.f32.mrb[0].mxu0
        %v609 = vadd.f32 %v517, %v608
        %v610 = vpop.f32.mrb[0].mxu0
        %611 = vmatprep.mubr.bf16.mxu0 0
        %612 = vmatmul.mubr.bf16.gmra.mrb[0].mxu0 %v551
        %v613 = vpop.f32.mrb[0].mxu0
        %v614 = vadd.f32 %v517, %v613
        %v615 = vpop.f32.mrb[0].mxu0
        %v616 = vpop.f32.mrb[0].mxu0
        %v617 = vadd.f32 %v517, %v616
        %v618 = vpop.f32.mrb[0].mxu0
        %619 = vmatprep.mubr.bf16.mxu0 0
        %620 = vmatmul.mubr.bf16.gmra.mrb[0].mxu0 %v554
        %v621 = vpop.f32.mrb[0].mxu0
        %v622 = vadd.f32 %v517, %v621
        %v623 = vpop.f32.mrb[0].mxu0
        %v624 = vpop.f32.mrb[0].mxu0
        %v625 = vadd.f32 %v517, %v624
        %v626 = vpop.f32.mrb[0].mxu0
        %627 = vmatprep.mubr.bf16.mxu0 0
        %628 = vmatmul.mubr.bf16.gmra.mrb[0].mxu0 %v557
        %v629 = vpop.f32.mrb[0].mxu0
        %v630 = vadd.f32 %v517, %v629
        %v631 = vpop.f32.mrb[0].mxu0
        %v632 = vpop.f32.mrb[0].mxu0
        %v633 = vadd.f32 %v517, %v632
        %v634 = vpop.f32.mrb[0].mxu0
        %635 = vmatprep.mubr.bf16.mxu0 0
        %636 = vmatmul.mubr.bf16.gmra.mrb[0].mxu0 %v560
        %v637 = vpop.f32.mrb[0].mxu0
        %v638 = vadd.f32 %v517, %v637
        %v639 = vpop.f32.mrb[0].mxu0
        %v640 = vpop.f32.mrb[0].mxu0
        %v641 = vadd.f32 %v517, %v640
        %v642 = vpop.f32.mrb[0].mxu0
        %643 = vmatprep.mubr.bf16.mxu0 0
        %644 = vmatmul.mubr.bf16.gmra.mrb[0].mxu0 %v563
        %v645 = vpop.f32.mrb[0].mxu0
        %v646 = vadd.f32 %v517, %v645
        %v647 = vpop.f32.mrb[0].mxu0
        %v648 = vpop.f32.mrb[0].mxu0
        %v649 = vadd.f32 %v517, %v648
        %v650 = vpop.f32.mrb[0].mxu0
        %651 = vmatprep.mubr.bf16.mxu0 0
        %652 = vmatmul.mubr.bf16.gmra.mrb[0].mxu0 %v566
        %v653 = vpop.f32.mrb[0].mxu0
        %v654 = vadd.f32 %v517, %v653
        %v655 = vpop.f32.mrb[0].mxu0
        %v656 = vpop.f32.mrb[0].mxu0
        %v657 = vadd.f32 %v517, %v656
        %v658 = vpop.f32.mrb[0].mxu0
        %659 = vmatprep.mubr.bf16.mxu0 0
        %660 = vmatmul.mubr.bf16.gmra.mrb[0].mxu0 %v569
        %v661 = vpop.f32.mrb[0].mxu0
        %v662 = vadd.f32 %v517, %v661
        %v663 = vpop.f32.mrb[0].mxu0
        %v664 = vpop.f32.mrb[0].mxu0
        %v665 = vadd.f32 %v517, %v664
        %v666 = vpop.f32.mrb[0].mxu0
        %667 = vdwg.mxu0
        %v668 = vpack.c.bf16 %v609, %v606
        %v669 = vpack.c.bf16 %v617, %v614
        %v670 = vpack.c.bf16 %v625, %v622
        %v671 = vpack.c.bf16 %v633, %v630
        %v672 = vpack.c.bf16 %v641, %v638
        %v673 = vpack.c.bf16 %v649, %v646
        %v674 = vpack.c.bf16 %v657, %v654
        %v675 = vpack.c.bf16 %v665, %v662
        %vm676 = vcmask 130048
        %v678 = vsel %vm676, %v668, 0
        %v681 = vsel %vm676, %v669, 0
        %v684 = vsel %vm676, %v670, 0
        %v687 = vsel %vm676, %v671, 0
        %v690 = vsel %vm676, %v672, 0
        %v693 = vsel %vm676, %v673, 0
        %v696 = vsel %vm676, %v674, 0
        %v699 = vsel %vm676, %v675, 0
        %701 = vmatprep.subr.bf16.mxu0 %v501
        %702 = vmatpush1.bf16.msra.mxu0 %v500
        %703 = vmatprep.subr.bf16.mxu0 0
        %704 = vmatpush1.bf16.msra.mxu0 0
        %705 = vmatprep.subr.bf16.mxu0 0
        %706 = vmatpush1.bf16.msra.mxu0 0
        %707 = vmatprep.subr.bf16.mxu0 0
        %708 = vmatpush1.bf16.msra.mxu0 0
        %709 = vmatprep.subr.bf16.mxu0 0
        %710 = vmatpush1.bf16.msra.mxu0 0
        %711 = vmatprep.subr.bf16.mxu0 0
        %712 = vmatpush1.bf16.msra.mxu0 0
        %713 = vmatprep.subr.bf16.mxu0 0
        %714 = vmatpush1.bf16.msra.mxu0 0
        %715 = vmatprep.subr.bf16.mxu0 0
        %716 = vmatpush1.bf16.msra.mxu0 0
        %717 = vmatprep.subr.bf16.mxu0 0
        %718 = vmatpush1.bf16.msra.mxu0 0
        %719 = vmatprep.subr.bf16.mxu0 0
        %720 = vmatpush1.bf16.msra.mxu0 0
        %721 = vmatprep.subr.bf16.mxu0 0
        %722 = vmatpush1.bf16.msra.mxu0 0
        %723 = vmatprep.subr.bf16.mxu0 0
        %724 = vmatpush1.bf16.msra.mxu0 0
        %725 = vmatprep.subr.bf16.mxu0 0
        %726 = vmatpush1.bf16.msra.mxu0 0
        %727 = vmatprep.subr.bf16.mxu0 0
        %728 = vmatpush1.bf16.msra.mxu0 0
        %729 = vmatprep.subr.bf16.mxu0 0
        %730 = vmatpush1.bf16.msra.mxu0 0
        %731 = vmatprep.subr.bf16.mxu0 0
        %732 = vmatpush1.bf16.msra.mxu0 0
        %733 = vmatprep.mubr.bf16.mxu0 0
        %734 = vmatmul.mubr.bf16.gmra.mrb[0].mxu0 %v678
        %v735 = vpop.f32.mrb[0].mxu0
        %v736 = vadd.f32 0.0, %v735
        %v737 = vpop.f32.mrb[0].mxu0
        %v738 = vadd.f32 0.0, %v737
        %v739 = vpop.f32.mrb[0].mxu0
        %v740 = vadd.f32 0.0, %v739
        %v741 = vpop.f32.mrb[0].mxu0
        %v742 = vadd.f32 0.0, %v741
        %743 = vmatprep.mubr.bf16.mxu0 0
        %744 = vmatmul.mubr.bf16.gmra.mrb[0].mxu0 %v681
        %v745 = vpop.f32.mrb[0].mxu0
        %v746 = vadd.f32 0.0, %v745
        %v747 = vpop.f32.mrb[0].mxu0
        %v748 = vadd.f32 0.0, %v747
        %v749 = vpop.f32.mrb[0].mxu0
        %v750 = vadd.f32 0.0, %v749
        %v751 = vpop.f32.mrb[0].mxu0
        %v752 = vadd.f32 0.0, %v751
        %753 = vmatprep.mubr.bf16.mxu0 0
        %754 = vmatmul.mubr.bf16.gmra.mrb[0].mxu0 %v684
        %v755 = vpop.f32.mrb[0].mxu0
        %v756 = vadd.f32 0.0, %v755
        %v757 = vpop.f32.mrb[0].mxu0
        %v758 = vadd.f32 0.0, %v757
        %v759 = vpop.f32.mrb[0].mxu0
        %v760 = vadd.f32 0.0, %v759
        %v761 = vpop.f32.mrb[0].mxu0
        %v762 = vadd.f32 0.0, %v761
        %763 = vmatprep.mubr.bf16.mxu0 0
        %764 = vmatmul.mubr.bf16.gmra.mrb[0].mxu0 %v687
        %v765 = vpop.f32.mrb[0].mxu0
        %v766 = vadd.f32 0.0, %v765
        %v767 = vpop.f32.mrb[0].mxu0
        %v768 = vadd.f32 0.0, %v767
        %v769 = vpop.f32.mrb[0].mxu0
        %v770 = vadd.f32 0.0, %v769
        %v771 = vpop.f32.mrb[0].mxu0
        %v772 = vadd.f32 0.0, %v771
        %773 = vmatprep.mubr.bf16.mxu0 0
        %774 = vmatmul.mubr.bf16.gmra.mrb[0].mxu0 %v690
        %v775 = vpop.f32.mrb[0].mxu0
        %v776 = vadd.f32 0.0, %v775
        %v777 = vpop.f32.mrb[0].mxu0
        %v778 = vadd.f32 0.0, %v777
        %v779 = vpop.f32.mrb[0].mxu0
        %v780 = vadd.f32 0.0, %v779
        %v781 = vpop.f32.mrb[0].mxu0
        %v782 = vadd.f32 0.0, %v781
        %783 = vmatprep.mubr.bf16.mxu0 0
        %784 = vmatmul.mubr.bf16.gmra.mrb[0].mxu0 %v693
        %v785 = vpop.f32.mrb[0].mxu0
        %v786 = vadd.f32 0.0, %v785
        %v787 = vpop.f32.mrb[0].mxu0
        %v788 = vadd.f32 0.0, %v787
        %v789 = vpop.f32.mrb[0].mxu0
        %v790 = vadd.f32 0.0, %v789
        %v791 = vpop.f32.mrb[0].mxu0
        %v792 = vadd.f32 0.0, %v791
        %793 = vmatprep.mubr.bf16.mxu0 0
        %794 = vmatmul.mubr.bf16.gmra.mrb[0].mxu0 %v696
        %v795 = vpop.f32.mrb[0].mxu0
        %v796 = vadd.f32 0.0, %v795
        %v797 = vpop.f32.mrb[0].mxu0
        %v798 = vadd.f32 0.0, %v797
        %v799 = vpop.f32.mrb[0].mxu0
        %v800 = vadd.f32 0.0, %v799
        %v801 = vpop.f32.mrb[0].mxu0
        %v802 = vadd.f32 0.0, %v801
        %803 = vmatprep.mubr.bf16.mxu0 0
        %804 = vmatmul.mubr.bf16.gmra.mrb[0].mxu0 %v699
        %v805 = vpop.f32.mrb[0].mxu0
        %v806 = vadd.f32 0.0, %v805
        %v807 = vpop.f32.mrb[0].mxu0
        %v808 = vadd.f32 0.0, %v807
        %v809 = vpop.f32.mrb[0].mxu0
        %v810 = vadd.f32 0.0, %v809
        %v811 = vpop.f32.mrb[0].mxu0
        %v812 = vadd.f32 0.0, %v811
        %813 = vdwg.mxu0
        %v814 = vmax.f32 %v736, %v738
        %815 = vmax.xlane.f32.xlu0 %v814
        %v816 = vpop.xlane.xlu0 %815
        %v817 = vmax.f32 %v740, %v742
        %818 = vmax.xlane.f32.xlu0 %v817
        %v819 = vpop.xlane.xlu0 %818
        %v820 = vmax.f32 %v746, %v748
        %821 = vmax.xlane.f32.xlu0 %v820
        %v822 = vpop.xlane.xlu0 %821
        %v823 = vmax.f32 %v750, %v752
        %824 = vmax.xlane.f32.xlu0 %v823
        %v825 = vpop.xlane.xlu0 %824
        %v826 = vmax.f32 %v756, %v758
        %827 = vmax.xlane.f32.xlu0 %v826
        %v828 = vpop.xlane.xlu0 %827
        %v829 = vmax.f32 %v760, %v762
        %830 = vmax.xlane.f32.xlu0 %v829
        %v831 = vpop.xlane.xlu0 %830
        %v832 = vmax.f32 %v766, %v768
        %833 = vmax.xlane.f32.xlu0 %v832
        %v834 = vpop.xlane.xlu0 %833
        %v835 = vmax.f32 %v770, %v772
        %836 = vmax.xlane.f32.xlu0 %v835
        %v837 = vpop.xlane.xlu0 %836
        %v838 = vmax.f32 %v776, %v778
        %839 = vmax.xlane.f32.xlu0 %v838
        %v840 = vpop.xlane.xlu0 %839
        %v841 = vmax.f32 %v780, %v782
        %842 = vmax.xlane.f32.xlu0 %v841
        %v843 = vpop.xlane.xlu0 %842
        %v844 = vmax.f32 %v786, %v788
        %845 = vmax.xlane.f32.xlu0 %v844
        %v846 = vpop.xlane.xlu0 %845
        %v847 = vmax.f32 %v790, %v792
        %848 = vmax.xlane.f32.xlu0 %v847
        %v849 = vpop.xlane.xlu0 %848
        %v850 = vmax.f32 %v796, %v798
        %851 = vmax.xlane.f32.xlu0 %v850
        %v852 = vpop.xlane.xlu0 %851
        %v853 = vmax.f32 %v800, %v802
        %854 = vmax.xlane.f32.xlu0 %v853
        %v855 = vpop.xlane.xlu0 %854
        %v856 = vmax.f32 %v806, %v808
        %857 = vmax.xlane.f32.xlu0 %v856
        %v858 = vpop.xlane.xlu0 %857
        %v859 = vmax.f32 %v810, %v812
        %860 = vmax.xlane.f32.xlu0 %v859
        %v861 = vpop.xlane.xlu0 %860
        %v862 = vsub.f32 %v736, %v816
        %v863 = vsub.f32 %v738, %v816
        %v864 = vsub.f32 %v740, %v819
        %v865 = vsub.f32 %v742, %v819
        %v866 = vsub.f32 %v746, %v822
        %v867 = vsub.f32 %v748, %v822
        %v868 = vsub.f32 %v750, %v825
        %v869 = vsub.f32 %v752, %v825
        %v870 = vsub.f32 %v756, %v828
        %v871 = vsub.f32 %v758, %v828
        %v872 = vsub.f32 %v760, %v831
        %v873 = vsub.f32 %v762, %v831
        %v874 = vsub.f32 %v766, %v834
        %v875 = vsub.f32 %v768, %v834
        %v876 = vsub.f32 %v770, %v837
        %v877 = vsub.f32 %v772, %v837
        %v878 = vsub.f32 %v776, %v840
        %v879 = vsub.f32 %v778, %v840
        %v880 = vsub.f32 %v780, %v843
        %v881 = vsub.f32 %v782, %v843
        %v882 = vsub.f32 %v786, %v846
        %v883 = vsub.f32 %v788, %v846
        %v884 = vsub.f32 %v790, %v849
        %v885 = vsub.f32 %v792, %v849
        %v886 = vsub.f32 %v796, %v852
        %v887 = vsub.f32 %v798, %v852
        %v888 = vsub.f32 %v800, %v855
        %v889 = vsub.f32 %v802, %v855
        %v890 = vsub.f32 %v806, %v858
        %v891 = vsub.f32 %v808, %v858
        %v892 = vsub.f32 %v810, %v861
        %v893 = vsub.f32 %v812, %v861
        %v894 = vmul.f32 %v862, 1.442695
        %v895 = vpow.pop %v894
        %v896 = vmul.f32 %v863, 1.442695
        %v897 = vpow.pop %v896
        %v898 = vmul.f32 %v864, 1.442695
        %v899 = vpow.pop %v898
        %v900 = vmul.f32 %v865, 1.442695
        %v901 = vpow.pop %v900
        %v902 = vmul.f32 %v866, 1.442695
        %v903 = vpow.pop %v902
        %v904 = vmul.f32 %v867, 1.442695
        %v905 = vpow.pop %v904
        %v906 = vmul.f32 %v868, 1.442695
        %v907 = vpow.pop %v906
        %v908 = vmul.f32 %v869, 1.442695
        %v909 = vpow.pop %v908
        %v910 = vmul.f32 %v870, 1.442695
        %v911 = vpow.pop %v910
        %v912 = vmul.f32 %v871, 1.442695
        %v913 = vpow.pop %v912
        %v914 = vmul.f32 %v872, 1.442695
        %v915 = vpow.pop %v914
        %v916 = vmul.f32 %v873, 1.442695
        %v917 = vpow.pop %v916
        %v918 = vmul.f32 %v874, 1.442695
        %v919 = vpow.pop %v918
        %v920 = vmul.f32 %v875, 1.442695
        %v921 = vpow.pop %v920
        %v922 = vmul.f32 %v876, 1.442695
        %v923 = vpow.pop %v922
        %v924 = vmul.f32 %v877, 1.442695
        %v925 = vpow.pop %v924
        %v926 = vmul.f32 %v878, 1.442695
        %v927 = vpow.pop %v926
        %v928 = vmul.f32 %v879, 1.442695
        %v929 = vpow.pop %v928
        %v930 = vmul.f32 %v880, 1.442695
        %v931 = vpow.pop %v930
        %v932 = vmul.f32 %v881, 1.442695
        %v933 = vpow.pop %v932
        %v934 = vmul.f32 %v882, 1.442695
        %v935 = vpow.pop %v934
        %v936 = vmul.f32 %v883, 1.442695
        %v937 = vpow.pop %v936
        %v938 = vmul.f32 %v884, 1.442695
        %v939 = vpow.pop %v938
        %v940 = vmul.f32 %v885, 1.442695
        %v941 = vpow.pop %v940
        %v942 = vmul.f32 %v886, 1.442695
        %v943 = vpow.pop %v942
        %v944 = vmul.f32 %v887, 1.442695
        %v945 = vpow.pop %v944
        %v946 = vmul.f32 %v888, 1.442695
        %v947 = vpow.pop %v946
        %v948 = vmul.f32 %v889, 1.442695
        %v949 = vpow.pop %v948
        %v950 = vmul.f32 %v890, 1.442695
        %v951 = vpow.pop %v950
        %v952 = vmul.f32 %v891, 1.442695
        %v953 = vpow.pop %v952
        %v954 = vmul.f32 %v892, 1.442695
        %v955 = vpow.pop %v954
        %v956 = vmul.f32 %v893, 1.442695
        %v957 = vpow.pop %v956
        %v958 = vpack.c.bf16 %v899, %v895
        %v959 = vpack.c.bf16 %v901, %v897
        %v960 = vpack.c.bf16 %v907, %v903
        %v961 = vpack.c.bf16 %v909, %v905
        %v962 = vpack.c.bf16 %v915, %v911
        %v963 = vpack.c.bf16 %v917, %v913
        %v964 = vpack.c.bf16 %v923, %v919
        %v965 = vpack.c.bf16 %v925, %v921
        %v966 = vpack.c.bf16 %v931, %v927
        %v967 = vpack.c.bf16 %v933, %v929
        %v968 = vpack.c.bf16 %v939, %v935
        %v969 = vpack.c.bf16 %v941, %v937
        %v970 = vpack.c.bf16 %v947, %v943
        %v971 = vpack.c.bf16 %v949, %v945
        %v972 = vpack.c.bf16 %v955, %v951
        %v973 = vpack.c.bf16 %v957, %v953
        %974 = vmatprep.subr.bf16.mxu0 %v959
        %975 = vmatpush1.bf16.xpose.msra.mxu0 %v958
        %976 = vmatprep.subr.bf16.mxu0 %v961
        %977 = vmatpush1.bf16.xpose.msra.mxu0 %v960
        %978 = vmatprep.subr.bf16.mxu0 %v963
        %979 = vmatpush1.bf16.xpose.msra.mxu0 %v962
        %980 = vmatprep.subr.bf16.mxu0 %v965
        %981 = vmatpush1.bf16.xpose.msra.mxu0 %v964
        %982 = vmatprep.subr.bf16.mxu0 %v967
        %983 = vmatpush1.bf16.xpose.msra.mxu0 %v966
        %984 = vmatprep.subr.bf16.mxu0 %v969
        %985 = vmatpush1.bf16.xpose.msra.mxu0 %v968
        %986 = vmatprep.subr.bf16.mxu0 %v971
        %987 = vmatpush1.bf16.xpose.msra.mxu0 %v970
        %988 = vmatprep.subr.bf16.mxu0 %v973
        %989 = vmatpush1.bf16.xpose.msra.mxu0 %v972
        %990 = vmatprep.subr.bf16.mxu0 0
        %991 = vmatpush1.bf16.xpose.msra.mxu0 0
        %992 = vmatprep.subr.bf16.mxu0 0
        %993 = vmatpush1.bf16.xpose.msra.mxu0 0
        %994 = vmatprep.subr.bf16.mxu0 0
        %995 = vmatpush1.bf16.xpose.msra.mxu0 0
        %996 = vmatprep.subr.bf16.mxu0 0
        %997 = vmatpush1.bf16.xpose.msra.mxu0 0
        %998 = vmatprep.subr.bf16.mxu0 0
        %999 = vmatpush1.bf16.xpose.msra.mxu0 0
        %1000 = vmatprep.subr.bf16.mxu0 0
        %1001 = vmatpush1.bf16.xpose.msra.mxu0 0
        %1002 = vmatprep.subr.bf16.mxu0 0
        %1003 = vmatpush1.bf16.xpose.msra.mxu0 0
        %1004 = vmatprep.subr.bf16.mxu0 0
        %1005 = vmatpush1.bf16.xpose.msra.mxu0 0
        %1006 = vmatprep.mubr.bf16.mxu0 %v503
        %1007 = vmatmul.mubr.bf16.gmra.mrb[0].mxu0 %v502
        %v1008 = vpop.f32.mrb[0].mxu0
        %v1009 = vadd.f32 0.0, %v1008
        %v1010 = vpop.f32.mrb[0].mxu0
        %v1011 = vpop.f32.mrb[0].mxu0
        %v1012 = vadd.f32 0.0, %v1011
        %v1013 = vpop.f32.mrb[0].mxu0
        %1014 = vmatprep.mubr.bf16.mxu0 %v505
        %1015 = vmatmul.mubr.bf16.gmra.mrb[0].mxu0 %v504
        %v1016 = vpop.f32.mrb[0].mxu0
        %v1017 = vadd.f32 0.0, %v1016
        %v1018 = vpop.f32.mrb[0].mxu0
        %v1019 = vpop.f32.mrb[0].mxu0
        %v1020 = vadd.f32 0.0, %v1019
        %v1021 = vpop.f32.mrb[0].mxu0
        %1022 = vmatprep.mubr.bf16.mxu0 %v507
        %1023 = vmatmul.mubr.bf16.gmra.mrb[0].mxu0 %v506
        %v1024 = vpop.f32.mrb[0].mxu0
        %v1025 = vadd.f32 0.0, %v1024
        %v1026 = vpop.f32.mrb[0].mxu0
        %v1027 = vpop.f32.mrb[0].mxu0
        %v1028 = vpop.f32.mrb[0].mxu0
        %1029 = vdwg.mxu0
        %v1030 = vrcp.pop %v1025
        %v1031 = vlaneseq
        %v1032 = vshrl.u32 %v1031, 7
        %v1033 = vsub.s32 0, %v1032
        %v1034 = vrot.slane %v1030, %v1033
        %v1035 = vmul.f32 %v1009, %v1034
        %v1036 = vmul.f32 %v1012, %v1034
        %v1037 = vmul.f32 %v1017, %v1034
        %v1038 = vmul.f32 %v1020, %v1034
        %v1039 = vadd.f32 %v1035, %v331
        %v1040 = vadd.f32 %v1036, %v332
        %v1041 = vadd.f32 %v1037, %v333
        %v1042 = vadd.f32 %v1038, %v334
        %1043 = vst [vmem:[%s324] sm:$0xff] %v1039
        %1044 = vst [vmem:[%s324 + $0x8] sm:$0xff] %v1040
        %1045 = vst [vmem:[%s324 + $0x10] sm:$0xff] %v1041
        %1046 = vst [vmem:[%s324 + $0x18] sm:$0xff] %v1042
        %s1047 = sand.u32 %s177, 1
        %s1048 = sand.u32 %s177, 1
        %s1049 = smul.addr %s1048, 32
        %s1050 = scalar_lea.vmem [#allocation3], %s1049
        // Predicated region
        $region83: #{self_attn_forward.1} parent=77 // pred_check
          %p1051 = pneg %p187
        $region84: #{self_attn_forward.1} parent=77 // pred_check_branch
          %1053 = sbr.rel (%p1051) target = $region86
        $region85: #{self_attn_forward.1} parent=77 // pred_region
          %s1054 = smul.addr %s21, 8
          %s1055 = sadd.s32 %s22, %s1054
          %s1056 = smul.addr %s1055, 8
          %s1057 = scalar_lea.vmem %s6, %s1056
          // Predicated region
          $region87: #{self_attn_forward.1} parent=85 // pred_check
            _
          $region88: #{self_attn_forward.1} parent=85 // pred_check_branch
            %1059 = sbr.rel (0) target = $region90
          $region89: #{self_attn_forward.1} parent=85 // pred_region
            // Predicated region
            $region91: #{self_attn_forward.1} parent=89 // pred_check
              _
            $region92: #{self_attn_forward.1} parent=89 // pred_check_branch
              %1061 = sbr.rel (0) target = $region94
            $region93: #{self_attn_forward.1} parent=89 // pred_region
              // Predicated region
              $region106: #{self_attn_forward.1} parent=93 // pred_check
                _
              $region107: #{self_attn_forward.1} parent=93 // pred_check_branch
                %1082 = sbr.rel (0) target = $region109
              $region108: #{self_attn_forward.1} parent=93 // pred_region
                loop: start=0, step=1, limit=1
                $region110: #{self_attn_forward.1} parent=108 // loop_pre_header
                  _
                $region111: #{self_attn_forward.1} parent=108 // loop_header
                  %s1084 = sphi 0, %s1088
                  %p1085 = scmp.ge.s32.totalorder %s1084, 1
                  %s1089 = sphi %s1050, %s1050
                  %s1090 = sphi %s1057, %s1057
                $region112: #{self_attn_forward.1} parent=108 // loop_header_branch
                  %1087 = sbr.rel (%p1085) target = $region116
                $region113: #{self_attn_forward.1} parent=108 // loop_body
                  %v1091 = vld [vmem:[%s1089] sm:$0xff]
                  %1092 = vst [vmem:[%s1090] sm:$0xff] %v1091
                  %v1093 = vld [vmem:[%s1089 + $0x8] sm:$0xff]
                  %1094 = vst [vmem:[%s1090 + $0x10] sm:$0xff] %v1093
                  %v1095 = vld [vmem:[%s1089 + $0x10] sm:$0xff]
                  %1096 = vst [vmem:[%s1090 + $0x20] sm:$0xff] %v1095
                  %v1097 = vld [vmem:[%s1089 + $0x18] sm:$0xff]
                  %1098 = vst [vmem:[%s1090 + $0x30] sm:$0xff] %v1097
                $region114: #{self_attn_forward.1} parent=108 // loop_footer
                  %s1088 = sadd.s32 1, %s1084
                $region115: #{self_attn_forward.1} parent=108 // loop_footer_branch
                  %1083 = sbr.rel target = $region111
                $region116: #{self_attn_forward.1} parent=108 // loop_exit
                  _
              $region109: #{self_attn_forward.1} parent=93 // pred_fallthru
                _
              // Predicated region
              $region117: #{self_attn_forward.1} parent=93 // pred_check
                _
              $region118: #{self_attn_forward.1} parent=93 // pred_check_branch
                %1100 = sbr.rel target = $region120
              $region119: #{self_attn_forward.1} parent=93 // pred_region
                _
              $region120: #{self_attn_forward.1} parent=93 // pred_fallthru
                _
            $region94: #{self_attn_forward.1} parent=89 // pred_fallthru
              _
            // Predicated region
            $region95: #{self_attn_forward.1} parent=89 // pred_check
              _
            $region96: #{self_attn_forward.1} parent=89 // pred_check_branch
              %1063 = sbr.rel target = $region98
            $region97: #{self_attn_forward.1} parent=89 // pred_region
              loop: start=0, step=1, limit=1
              $region99: #{self_attn_forward.1} parent=97 // loop_pre_header
                _
              $region100: #{self_attn_forward.1} parent=97 // loop_header
                %s1066 = sphi 0, %s1070
                %p1067 = scmp.ge.s32.totalorder %s1066, 1
                %s1071 = sphi %s1050, %s1050
                %s1072 = sphi %s1057, %s1057
              $region101: #{self_attn_forward.1} parent=97 // loop_header_branch
                %1069 = sbr.rel (%p1067) target = $region105
              $region102: #{self_attn_forward.1} parent=97 // loop_body
                %v1073 = vld [vmem:[%s1071] sm:$0xff]
                %1074 = vst [vmem:[%s1072] sm:$0xff] %v1073
                %v1075 = vld [vmem:[%s1071 + $0x8] sm:$0xff]
                %1076 = vst [vmem:[%s1072 + $0x10] sm:$0xff] %v1075
                %v1077 = vld [vmem:[%s1071 + $0x10] sm:$0xff]
                %1078 = vst [vmem:[%s1072 + $0x20] sm:$0xff] %v1077
                %v1079 = vld [vmem:[%s1071 + $0x18] sm:$0xff]
                %1080 = vst [vmem:[%s1072 + $0x30] sm:$0xff] %v1079
              $region103: #{self_attn_forward.1} parent=97 // loop_footer
                %s1070 = sadd.s32 1, %s1066
              $region104: #{self_attn_forward.1} parent=97 // loop_footer_branch
                %1065 = sbr.rel target = $region100
              $region105: #{self_attn_forward.1} parent=97 // loop_exit
                _
            $region98: #{self_attn_forward.1} parent=89 // pred_fallthru
              _
          $region90: #{self_attn_forward.1} parent=85 // pred_fallthru
            _
          %1101 = vnop
        $region86: #{self_attn_forward.1} parent=77 // pred_fallthru
          _
      $region78: #{self_attn_forward.1} parent=5 // pred_fallthru
        _
      %p1102 = scmp.le.s32.totalorder 2, %s12
      // Predicated region
      $region121: #{self_attn_forward.1} parent=5 // pred_check
        %p1103 = pneg %p1102
      $region122: #{self_attn_forward.1} parent=5 // pred_check_branch
        %1105 = sbr.rel (%p1103) target = $region124
      $region123: #{self_attn_forward.1} parent=5 // pred_region
        %s1106 = ssub.s32 %s12, 2
        // Predicated region
        $region125: #{self_attn_forward.1} parent=123 // pred_check
          %p1107 = pneg %p193
        $region126: #{self_attn_forward.1} parent=123 // pred_check_branch
          %1109 = sbr.rel (%p1107) target = $region128
        $region127: #{self_attn_forward.1} parent=123 // pred_region
          %s1110 = sand.u32 %s178, 1
          %s1111 = sand.u32 %s178, 1
          %s1112 = smul.addr %s1111, 32
          %s1113 = scalar_lea.vmem [#allocation3], %s1112
        $region128: #{self_attn_forward.1} parent=123 // pred_fallthru
          _
      $region124: #{self_attn_forward.1} parent=5 // pred_fallthru
        _
    $region6: #{self_attn_forward.1} parent=1 // loop_footer
      %s16 = sadd.s32 1, %s12
    $region7: #{self_attn_forward.1} parent=1 // loop_footer_branch
      %11 = sbr.rel target = $region3
    $region8: #{self_attn_forward.1} parent=1 // loop_exit
      _

</llo_original>
